<compile_context>
chip_gen: v7x
topology: tpu7x:2x2x1
jax: 0.10.0
libtpu: 0.0.40
codegen_flags: <defaults>
</compile_context>

<pallas_src>
import math
from functools import partial

import numpy as np
import jax
import jax.numpy as jnp
from jax.experimental import pallas as pl
from jax.experimental.pallas import tpu as pltpu


def _round_up(x, m):
    return (x + m - 1) // m * m


# ----------------------------------------------------------------------------
# Pallas kernel 1: fused  (cols @ w) * scale + shift  [+ ReLU]
#   - K, Cout padded to multiples of 128 (full-width MXU feeds, unmasked stores)
#   - bf16 operands, f32 accumulation
# ----------------------------------------------------------------------------
def _mm_affine_kernel(cols_ref, w_ref, scale_ref, shift_ref, out_ref, *, relu):
    acc = jnp.dot(cols_ref[...], w_ref[...], preferred_element_type=jnp.float32)
    acc = acc * scale_ref[...] + shift_ref[...]        # bias folded into shift
    if relu:
        acc = jnp.maximum(acc, 0.0)
    out_ref[...] = acc.astype(out_ref.dtype)


def matmul_affine(cols, w, scale, shift, *, relu):
    """cols: (M, K) ; w: (K, Cout).  Returns f32 (M, Cout)."""
    M, K = cols.shape
    Cout = w.shape[1]
    Mp, Kp, Cop = _round_up(M, 128), _round_up(K, 128), _round_up(Cout, 128)

    cols_p = jnp.pad(cols.astype(jnp.bfloat16), ((0, Mp - M), (0, Kp - K)))
    w_p = jnp.pad(w.astype(jnp.bfloat16), ((0, Kp - K), (0, Cop - Cout)))
    sc = jnp.pad(scale.astype(jnp.float32), (0, Cop - Cout)).reshape(1, Cop)
    sh = jnp.pad(shift.astype(jnp.float32), (0, Cop - Cout)).reshape(1, Cop)

    # Largest of (512, 256, 128) that divides Mp and leaves >=2 grid steps
    # (two TensorCores on v7x get work; never tiny tm=8 tiles).
    tm = 128
    for cand in (512, 256):
        if Mp % cand == 0 and Mp // cand >= 2:
            tm = cand
            break
    grid = (Mp // tm,)

    out = pl.pallas_call(
        partial(_mm_affine_kernel, relu=relu),
        out_shape=jax.ShapeDtypeStruct((Mp, Cop), jnp.float32),
        grid=grid,
        in_specs=[
            pl.BlockSpec((tm, Kp), lambda i: (i, 0)),
            pl.BlockSpec((Kp, Cop), lambda i: (0, 0)),
            pl.BlockSpec((1, Cop), lambda i: (0, 0)),
            pl.BlockSpec((1, Cop), lambda i: (0, 0)),
        ],
        out_specs=pl.BlockSpec((tm, Cop), lambda i: (i, 0)),
        compiler_params=pltpu.CompilerParams(
            dimension_semantics=("parallel",),
            vmem_limit_bytes=32 * 1024 * 1024),
    )(cols_p, w_p, sc, sh)
    return out[:M, :Cout]


# ----------------------------------------------------------------------------
# Pallas kernel 2: direct 3x3 conv (stride 1, pad 1) + fused affine [+ ReLU]
#   The spatially padded NHWC image is flattened to (rows*S, C) with S = W+2,
#   so every kernel tap (i,j) is the contiguous 2-D slice starting at i*S+j.
#   No im2col columns ever hit HBM.
# ----------------------------------------------------------------------------
def _conv3x3_kernel(xf_ref, w_ref, scale_ref, shift_ref, out_ref, *, relu, H, S):
    Cop = out_ref.shape[-1]
    HS = H * S
    acc = jnp.zeros((HS, Cop), jnp.float32)
    for k in range(9):
        i, j = divmod(k, 3)
        off = i * S + j
        patch = xf_ref[0, off:off + HS, :]                       # (H*S, C) bf16
        acc = acc + jnp.dot(patch, w_ref[k], preferred_element_type=jnp.float32)
    acc = acc * scale_ref[...] + shift_ref[...]
    if relu:
        acc = jnp.maximum(acc, 0.0)
    out_ref[0] = acc.astype(out_ref.dtype)


def conv3x3_affine(x_nhwc, w, scale, shift, *, relu):
    """x: (N, H, W, C) ; w: (Cout, C, 3, 3) (PyTorch layout). Returns (N,H,W,Cout)."""
    N, H, W, C = x_nhwc.shape
    Cout = w.shape[0]
    Cop = _round_up(Cout, 128)
    S = W + 2

    xp = jnp.pad(x_nhwc, ((0, 0), (1, 1), (1, 1), (0, 0))).astype(jnp.bfloat16)
    xf = xp.reshape(N, (H + 2) * S, C)
    xf = jnp.pad(xf, ((0, 0), (0, 2), (0, 0)))        # tail rows for corner taps
    wk = jnp.pad(w.transpose(2, 3, 1, 0).reshape(9, C, Cout).astype(jnp.bfloat16),
                 ((0, 0), (0, 0), (0, Cop - Cout)))
    sc = jnp.pad(scale.astype(jnp.float32), (0, Cop - Cout)).reshape(1, Cop)
    sh = jnp.pad(shift.astype(jnp.float32), (0, Cop - Cout)).reshape(1, Cop)

    out = pl.pallas_call(
        partial(_conv3x3_kernel, relu=relu, H=H, S=S),
        out_shape=jax.ShapeDtypeStruct((N, H * S, Cop), jnp.float32),
        grid=(N,),
        in_specs=[
            pl.BlockSpec((1, (H + 2) * S + 2, C), lambda n: (n, 0, 0)),
            pl.BlockSpec((9, C, Cop), lambda n: (0, 0, 0)),
            pl.BlockSpec((1, Cop), lambda n: (0, 0)),
            pl.BlockSpec((1, Cop), lambda n: (0, 0)),
        ],
        out_specs=pl.BlockSpec((1, H * S, Cop), lambda n: (n, 0, 0)),
        compiler_params=pltpu.CompilerParams(
            dimension_semantics=("parallel",),
            vmem_limit_bytes=32 * 1024 * 1024),
    )(xf, wk, sc, sh)
    # drop the padded "junk" columns and the Cout padding
    return out.reshape(N, H, S, Cop)[:, :, :W, :Cout]


# ----------------------------------------------------------------------------
# Pallas kernel 3: 2x bilinear upsample (align_corners=True) + fused skip-add
#   Works on (N*C, H, W) slabs, Bblk slabs per grid step (batched matmuls).
# ----------------------------------------------------------------------------
def _upsample_kernel(x_ref, uy_ref, uxt_ref, *rest, has_skip):
    if has_skip:
        skip_ref, out_ref = rest
    else:
        (out_ref,) = rest
    x = x_ref[...]                                               # (B, H, W)
    B = x.shape[0]
    uy = jnp.broadcast_to(uy_ref[...], (B,) + uy_ref.shape)       # (B, 2H, H)
    uxt = jnp.broadcast_to(uxt_ref[...], (B,) + uxt_ref.shape)    # (B, W, 2W)
    t = jnp.einsum('boh,bhw->bow', uy, x, preferred_element_type=jnp.float32)
    y = jnp.einsum('bow,bwp->bop', t, uxt, preferred_element_type=jnp.float32)
    if has_skip:
        y = y + skip_ref[...]
    out_ref[...] = y.astype(out_ref.dtype)


def _interp_matrix(out_size, in_size):
    """align_corners=True linear interpolation matrix (out_size, in_size)."""
    if in_size == 1:
        return jnp.ones((out_size, 1), jnp.float32)
    m = np.zeros((out_size, in_size), np.float32)
    c = np.arange(out_size, dtype=np.float64) * (in_size - 1) / (out_size - 1)
    lo = np.floor(c).astype(np.int64)
    hi = np.minimum(lo + 1, in_size - 1)
    frac = (c - lo).astype(np.float32)
    m[np.arange(out_size), lo] += 1.0 - frac
    m[np.arange(out_size), hi] += frac
    return jnp.asarray(m)


def _pick_bblk(B, H, W):
    """Largest divisor of B that fits a VMEM budget and still leaves >=2 steps."""
    per_slab_bytes = 9 * H * W * 4            # x + skip + out (f32), rough
    cap = max(1, (8 << 20) // max(per_slab_bytes, 1))
    limit = min(cap, max(1, B // 2))
    best = 1
    for d in range(1, B + 1):
        if B % d == 0 and d <= limit:
            best = d
    return best


def upsample2x_add(x, skip=None):
    """x: (N, C, H, W) -> (N, C, 2H, 2W); if skip is given, returns upsample(x)+skip."""
    N, C, H, W = x.shape
    B = N * C
    Uy = _interp_matrix(2 * H, H)
    UxT = _interp_matrix(2 * W, W).T
    xs = x.reshape(B, H, W).astype(jnp.float32)
    Bblk = _pick_bblk(B, H, W)
    grid = (B // Bblk,)

    in_specs = [
        pl.BlockSpec((Bblk, H, W), lambda b: (b, 0, 0)),
        pl.BlockSpec((2 * H, H), lambda b: (0, 0)),
        pl.BlockSpec((W, 2 * W), lambda b: (0, 0)),
    ]
    args = [xs, Uy, UxT]
    if skip is not None:
        in_specs.append(pl.BlockSpec((Bblk, 2 * H, 2 * W), lambda b: (b, 0, 0)))
        args.append(skip.reshape(B, 2 * H, 2 * W).astype(jnp.float32))

    out = pl.pallas_call(
        partial(_upsample_kernel, has_skip=skip is not None),
        out_shape=jax.ShapeDtypeStruct((B, 2 * H, 2 * W), jnp.float32),
        grid=grid,
        in_specs=in_specs,
        out_specs=pl.BlockSpec((Bblk, 2 * H, 2 * W), lambda b: (b, 0, 0)),
        compiler_params=pltpu.CompilerParams(
            dimension_semantics=("parallel",),
            vmem_limit_bytes=32 * 1024 * 1024),
    )(*args)
    return out.reshape(N, C, 2 * H, 2 * W)


# ----------------------------------------------------------------------------
# DCNv2 deformable sampling (data-dependent gather, stays in XLA; NHWC)
# ----------------------------------------------------------------------------
def dcn_sample_cols(x, offset, mask):
    """x:(N,H,W,C), offset:(N,H,W,18), mask:(N,H,W,9) -> cols (N*H*W, 9*C)."""
    # TODO(synk): the per-pixel data-dependent bilinear gather has no clean
    # Pallas TPU equivalent; it stays in XLA, the contraction runs in the fused
    # Pallas matmul kernel.
    N, H, W, C = x.shape
    xf = x.reshape(N, H * W, C)
    hh = jnp.arange(H, dtype=jnp.float32)[None, :, None]
    ww = jnp.arange(W, dtype=jnp.float32)[None, None, :]

    def bilinear(py, px):
        y0 = jnp.floor(py)
        x0 = jnp.floor(px)
        ly, lx = py - y0, px - x0
        hy, hx = 1.0 - ly, 1.0 - lx

        def corner(yi, xi):
            valid = (yi >= 0) & (yi <= H - 1) & (xi >= 0) & (xi <= W - 1)
            yc = jnp.clip(yi, 0, H - 1).astype(jnp.int32)
            xc = jnp.clip(xi, 0, W - 1).astype(jnp.int32)
            idx = (yc * W + xc).reshape(N, H * W, 1)
            g = jnp.take_along_axis(xf, jnp.broadcast_to(idx, (N, H * W, C)), axis=1)
            g = jnp.where(valid.reshape(N, H * W, 1), g, 0.0)
            return g.reshape(N, H, W, C)

        return ((hy * hx)[..., None] * corner(y0, x0)
                + (hy * lx)[..., None] * corner(y0, x0 + 1)
                + (ly * hx)[..., None] * corner(y0 + 1, x0)
                + (ly * lx)[..., None] * corner(y0 + 1, x0 + 1))

    taps = []
    for k in range(9):
        i, j = divmod(k, 3)
        py = hh + (i - 1) + offset[..., 2 * k]
        px = ww + (j - 1) + offset[..., 2 * k + 1]
        taps.append(bilinear(py, px) * mask[..., k:k + 1])
    col = jnp.stack(taps, axis=3)                      # (N, H, W, 9, C)
    return col.reshape(N * H * W, 9 * C)


# ----------------------------------------------------------------------------
# DeformConv (DCNv2 + BN(eval) + ReLU) and IDAUpV3
# ----------------------------------------------------------------------------
def make_deform_conv_params(key, chi, cho):
    k = jax.random.split(key, 6)
    return dict(
        w_om=0.05 * jax.random.normal(k[0], (27, chi, 3, 3), jnp.float32),
        b_om=0.05 * jax.random.normal(k[1], (27,), jnp.float32),
        w=0.10 * jax.random.normal(k[2], (cho, chi, 3, 3), jnp.float32),
        b=0.10 * jax.random.normal(k[3], (cho,), jnp.float32),
        gamma=1.0 + 0.1 * jax.random.normal(k[4], (cho,), jnp.float32),
        beta=0.1 * jax.random.normal(k[5], (cho,), jnp.float32),
        running_mean=jnp.zeros((cho,), jnp.float32),
        running_var=jnp.ones((cho,), jnp.float32),
    )


def deform_conv_apply(p, x_nchw):
    """x: (N, Ci, H, W) -> (N, Cout, H, W)."""
    N, Ci, H, W = x_nchw.shape
    Cout = p["w"].shape[0]
    x = x_nchw.transpose(0, 2, 3, 1)                   # NHWC (channels on lanes)

    # 1) offset/mask conv (plain 3x3, pad 1) via direct-conv Pallas kernel
    om = conv3x3_affine(x, p["w_om"],
                        scale=jnp.ones((27,), jnp.float32),
                        shift=p["b_om"], relu=False)    # (N, H, W, 27)
    o1, o2, m = om[..., 0:9], om[..., 9:18], om[..., 18:27]
    offset = jnp.concatenate([o1, o2], axis=-1)         # (N, H, W, 18)
    mask = jax.nn.sigmoid(m)                            # (N, H, W, 9)

    # 2) deformable sampling (XLA) + fused matmul + bias + BN(eval) + ReLU
    cols = dcn_sample_cols(x, offset, mask)             # (N*H*W, 9*Ci)
    w = p["w"].transpose(2, 3, 1, 0).reshape(9 * Ci, Cout)
    scale = p["gamma"] * jax.lax.rsqrt(p["running_var"] + 1e-5)
    shift = p["beta"] + (p["b"] - p["running_mean"]) * scale   # bias folded in
    y = matmul_affine(cols, w, scale, shift, relu=True)        # (N*H*W, Cout)
    return y.reshape(N, H, W, Cout).transpose(0, 3, 1, 2)


def ida_up_v3_forward(node_params, layers, startp, endp):
    """Mirror of IDAUpV3.forward (returns [layers[startp]]).

    The intermediate `layers[i] = upsample(layers[i])` writes are not needed for
    the returned value, so the upsample and the skip-add are fused in one kernel.
    """
    layers = list(layers)
    for i in range(endp - 1, startp, -1):
        fused = upsample2x_add(layers[i], skip=layers[i - 1])   # up(layers[i]) + layers[i-1]
        layers[i - 1] = deform_conv_apply(node_params[i], fused)
    up0 = upsample2x_add(layers[startp], skip=None)
    layers[startp] = deform_conv_apply(node_params[startp], up0)
    return [layers[startp]]


# ----------------------------------------------------------------------------
if __name__ == "__main__":
    key = jax.random.PRNGKey(0)
    N, C, o = 2, 4, 8
    channels = (C, C, C)           # equal channels (required by the skip-add)

    k_in, k_p = jax.random.split(key)
    k0, k1, k2 = jax.random.split(k_in, 3)
    layers = [
        jax.random.normal(k0, (N, C, 16, 16), jnp.float32),
        jax.random.normal(k1, (N, C, 8, 8), jnp.float32),
        jax.random.normal(k2, (N, C, 4, 4), jnp.float32),
    ]

    kp = jax.random.split(k_p, len(channels))
    node_params = []
    for i, c in enumerate(channels):
        cout = o if i == 0 else c
        node_params.append(make_deform_conv_params(kp[i], c, cout))

    out = ida_up_v3_forward(node_params, layers, startp=0, endp=len(channels))
    result = jax.block_until_ready(out[0])
    assert result.shape == (N, o, 32, 32), result.shape
    assert bool(jnp.all(jnp.isfinite(result)))
    print("KERNEL_OK")
</pallas_src>

<mosaic_0001>
module attributes {stable_mosaic.version = 11 : i64} {
  func.func @_upsample_kernel(%arg0: i32, %arg1: memref<4x4x4xf32, #tpu.memory_space<vmem>>, %arg2: memref<8x4xf32, #tpu.memory_space<vmem>>, %arg3: memref<4x8xf32, #tpu.memory_space<vmem>>, %arg4: memref<4x8x8xf32, #tpu.memory_space<vmem>>, %arg5: memref<4x8x8xf32, #tpu.memory_space<vmem>>) attributes {dimension_semantics = [#tpu.dimension_semantics<parallel>], iteration_bounds = array<i64: 2>, scalar_prefetch = 0 : i64, scratch_operands = 0 : i64, tpu.core_type = #tpu.core_type<tc>, window_params = [{transform_indices = @transform_0, window_bounds = array<i64: 4, 4, 4>}, {pipeline_mode = #tpu.pipeline_mode<synchronous>, transform_indices = @transform_1, window_bounds = array<i64: 8, 4>}, {pipeline_mode = #tpu.pipeline_mode<synchronous>, transform_indices = @transform_2, window_bounds = array<i64: 4, 8>}, {transform_indices = @transform_3, window_bounds = array<i64: 4, 8, 8>}, {transform_indices = @transform_4, window_bounds = array<i64: 4, 8, 8>}]} {
    %c0 = arith.constant 0 : index
    %c0_0 = arith.constant 0 : index
    %c0_1 = arith.constant 0 : index
    %0 = vector.load %arg1[%c0, %c0_0, %c0_1] : memref<4x4x4xf32, #tpu.memory_space<vmem>>, vector<4x4x4xf32>
    %c0_2 = arith.constant 0 : index
    %c0_3 = arith.constant 0 : index
    %1 = vector.load %arg2[%c0_2, %c0_3] : memref<8x4xf32, #tpu.memory_space<vmem>>, vector<8x4xf32>
    %2 = vector.shape_cast %1 : vector<8x4xf32> to vector<1x8x4xf32>
    %3 = vector.broadcast %2 : vector<1x8x4xf32> to vector<4x8x4xf32>
    %c0_4 = arith.constant 0 : index
    %c0_5 = arith.constant 0 : index
    %4 = vector.load %arg3[%c0_4, %c0_5] : memref<4x8xf32, #tpu.memory_space<vmem>>, vector<4x8xf32>
    %5 = vector.shape_cast %4 : vector<4x8xf32> to vector<1x4x8xf32>
    %6 = vector.broadcast %5 : vector<1x4x8xf32> to vector<4x4x8xf32>
    "tpu.trace_start"() <{level = 10 : i32, message = "boh,bhw->bow"}> : () -> ()
    %cst = arith.constant dense<0.000000e+00> : vector<4x8x4xf32>
    %7 = tpu.matmul %3, %0, %cst {dimension_numbers = #tpu.dot_dimension_numbers<[2], [1], [1], [2], [0, 0, 0, 1, 1, 2], [0], [0]>} : vector<4x8x4xf32>, vector<4x4x4xf32>, vector<4x8x4xf32> -> vector<4x8x4xf32>
    "tpu.trace_stop"() : () -> ()
    "tpu.trace_start"() <{level = 10 : i32, message = "bow,bwp->bop"}> : () -> ()
    %cst_6 = arith.constant dense<0.000000e+00> : vector<4x8x8xf32>
    %8 = tpu.matmul %7, %6, %cst_6 {dimension_numbers = #tpu.dot_dimension_numbers<[2], [1], [1], [2], [0, 0, 0, 1, 1, 2], [0], [0]>} : vector<4x8x4xf32>, vector<4x4x8xf32>, vector<4x8x8xf32> -> vector<4x8x8xf32>
    "tpu.trace_stop"() : () -> ()
    %c0_7 = arith.constant 0 : index
    %c0_8 = arith.constant 0 : index
    %c0_9 = arith.constant 0 : index
    %9 = vector.load %arg4[%c0_7, %c0_8, %c0_9] : memref<4x8x8xf32, #tpu.memory_space<vmem>>, vector<4x8x8xf32>
    %10 = arith.addf %8, %9 : vector<4x8x8xf32>
    %c0_10 = arith.constant 0 : index
    %c0_11 = arith.constant 0 : index
    %c0_12 = arith.constant 0 : index
    %11 = vector.load %arg5[%c0_10, %c0_11, %c0_12] : memref<4x8x8xf32, #tpu.memory_space<vmem>>, vector<4x8x8xf32>
    tpu.vector_store %arg5[%c0_10, %c0_11, %c0_12], %10 {strides = array<i32>} : memref<4x8x8xf32, #tpu.memory_space<vmem>>, vector<4x8x8xf32>,
    return
  }
  func.func @transform_0(%arg0: i32) -> (i32, i32, i32) {
    %c0_i32 = arith.constant 0 : i32
    %c0_i32_0 = arith.constant 0 : i32
    %c0_i32_1 = arith.constant 0 : i32
    return %arg0, %c0_i32, %c0_i32_0 : i32, i32, i32
  }
  func.func @transform_1(%arg0: i32) -> (i32, i32) {
    %c0_i32 = arith.constant 0 : i32
    %c0_i32_0 = arith.constant 0 : i32
    %c0_i32_1 = arith.constant 0 : i32
    return %c0_i32, %c0_i32_0 : i32, i32
  }
  func.func @transform_2(%arg0: i32) -> (i32, i32) {
    %c0_i32 = arith.constant 0 : i32
    %c0_i32_0 = arith.constant 0 : i32
    %c0_i32_1 = arith.constant 0 : i32
    return %c0_i32, %c0_i32_0 : i32, i32
  }
  func.func @transform_3(%arg0: i32) -> (i32, i32, i32) {
    %c0_i32 = arith.constant 0 : i32
    %c0_i32_0 = arith.constant 0 : i32
    %c0_i32_1 = arith.constant 0 : i32
    return %arg0, %c0_i32, %c0_i32_0 : i32, i32, i32
  }
  func.func @transform_4(%arg0: i32) -> (i32, i32, i32) {
    %c0_i32 = arith.constant 0 : i32
    %c0_i32_0 = arith.constant 0 : i32
    %c0_i32_1 = arith.constant 0 : i32
    return %arg0, %c0_i32, %c0_i32_0 : i32, i32, i32
  }
}

</mosaic_0001>

<llo_original>
// kernel: tpu_custom_call.1
$region0: #{tpu_custom_call.1}
  #allocation0 [shape = 'u32[]', space=smem, size = 0x4, offset = 0x4, fixed_abs, tag = 'smem constant byte address 0x4 - core index']
  #allocation1 [shape = 'u32[144,128]{1,0:T(1,128)}', space=vmem, size = 0x12000, scoped, tag = 'internal scratch']
  %s0 = inlined_call_operand.vmem [shape: f32[8,4,4], index: 0, kind: input, shape index: {}]
  %s1 = inlined_call_operand.vmem [shape: f32[8,4], index: 1, kind: input, shape index: {}]
  %s2 = inlined_call_operand.vmem [shape: f32[4,8], index: 2, kind: input, shape index: {}]
  %s3 = inlined_call_operand.vmem [shape: f32[8,8,8], index: 3, kind: input, shape index: {}]
  %s4 = inlined_call_operand.hbm [shape: f32[8,8,8], index: 4, kind: output, shape index: {}]
  %s5 = sld [smem:[#allocation0]]
  $region49: #{tpu_custom_call.1} parent=0
    _
  %s7 = ssub.s32 1, %s5
  %s8 = scalar_select 0, %s7, %s5
  $region1: #{tpu_custom_call.1} parent=0
    #allocation2 [shape = 'u8[32768]{0}', space=vmem, size = 0x8000, scoped, tag = 'output window, operand 0']
    #allocation3 [shape = 's32[2]{0}', space=sflag, size = 0x8, scoped, tag = 'scoped memory for tpu_custom_call.1']
    %9 = vsyncpa [#allocation3], 0
    %s10 = scalar_lea.sflag [#allocation3], 1
    %11 = vsyncpa %s10, 0
    loop: start=0, step=1, limit=4
    $region2: #{tpu_custom_call.1} parent=1 // loop_pre_header
      _
    $region3: #{tpu_custom_call.1} parent=1 // loop_header
      %s13 = sphi 0, %s17
      %p14 = scmp.ge.s32.totalorder %s13, 4
      %s23 = sphi 0, %s25
      %s26 = sphi 0, %s23
      %s27 = sphi 0, %s26
      %s43 = sphi 0, %s27
      %s47 = sphi 0, %s47
      %s49 = sphi 0, %s47
      %s50 = sphi 0, %s49
      %s64 = sphi 0, %s50
      %s68 = sphi 0, %s68
      %s70 = sphi 0, %s68
      %s71 = sphi 0, %s70
      %s85 = sphi 0, %s71
      %s91 = sphi 0, %s93
      %s94 = sphi 0, %s91
      %s95 = sphi 0, %s94
      %s111 = sphi 0, %s95
      %s117 = sphi 0, %s119
      %s120 = sphi 0, %s117
      %s121 = sphi 0, %s120
      %s137 = sphi 0, %s121
    $region4: #{tpu_custom_call.1} parent=1 // loop_header_branch
      %16 = sbr.rel (%p14) target = $region8
    $region5: #{tpu_custom_call.1} parent=1 // loop_body
      %s18 = ssub.s32 %s13, 1
      %s19 = ssub.s32 %s13, 2
      %s20 = sadd.s32 %s13, 1
      %s21 = ssub.s32 %s13, %s20
      %p22 = scmp.eq.s32.totalorder %s21, 0
      %s24 = sadd.s32 %s23, 1
      %s25 = scalar_select %p22, %s23, %s24
      %p28 = pneg %p22
      %p29 = scmp.eq.s32.totalorder %s13, 1
      %p30 = por %p28, %p29
      %p31 = scmp.ne.s32.totalorder %s23, %s26
      %p32 = scmp.eq.s32.totalorder %s13, 0
      %p33 = por %p31, %p32
      %p34 = scmp.ne.s32.totalorder %s23, %s26
      %p35 = scmp.eq.s32.totalorder %s18, 1
      %p36 = por %p34, %p35
      %p37 = scmp.ne.s32.totalorder %s26, %s27
      %p38 = scmp.eq.s32.totalorder %s18, 0
      %p39 = por %p37, %p38
      %p40 = scmp.ne.s32.totalorder %s26, %s27
      %p41 = scmp.eq.s32.totalorder %s19, 1
      %p42 = por %p40, %p41
      %p44 = scmp.ne.s32.totalorder %s27, %s43
      %p45 = scmp.eq.s32.totalorder %s19, 0
      %p46 = por %p44, %p45
      %s48 = sadd.s32 %s47, 1
      %p51 = scmp.eq.s32.totalorder %s13, 1
      %p52 = scmp.ne.s32.totalorder %s47, %s49
      %p53 = scmp.eq.s32.totalorder %s13, 0
      %p54 = por %p52, %p53
      %p55 = scmp.ne.s32.totalorder %s47, %s49
      %p56 = scmp.eq.s32.totalorder %s18, 1
      %p57 = por %p55, %p56
      %p58 = scmp.ne.s32.totalorder %s49, %s50
      %p59 = scmp.eq.s32.totalorder %s18, 0
      %p60 = por %p58, %p59
      %p61 = scmp.ne.s32.totalorder %s49, %s50
      %p62 = scmp.eq.s32.totalorder %s19, 1
      %p63 = por %p61, %p62
      %p65 = scmp.ne.s32.totalorder %s50, %s64
      %p66 = scmp.eq.s32.totalorder %s19, 0
      %p67 = por %p65, %p66
      %s69 = sadd.s32 %s68, 1
      %p72 = scmp.eq.s32.totalorder %s13, 1
      %p73 = scmp.ne.s32.totalorder %s68, %s70
      %p74 = scmp.eq.s32.totalorder %s13, 0
      %p75 = por %p73, %p74
      %p76 = scmp.ne.s32.totalorder %s68, %s70
      %p77 = scmp.eq.s32.totalorder %s18, 1
      %p78 = por %p76, %p77
      %p79 = scmp.ne.s32.totalorder %s70, %s71
      %p80 = scmp.eq.s32.totalorder %s18, 0
      %p81 = por %p79, %p80
      %p82 = scmp.ne.s32.totalorder %s70, %s71
      %p83 = scmp.eq.s32.totalorder %s19, 1
      %p84 = por %p82, %p83
      %p86 = scmp.ne.s32.totalorder %s71, %s85
      %p87 = scmp.eq.s32.totalorder %s19, 0
      %p88 = por %p86, %p87
      %s89 = ssub.s32 %s13, %s20
      %p90 = scmp.eq.s32.totalorder %s89, 0
      %s92 = sadd.s32 %s91, 1
      %s93 = scalar_select %p90, %s91, %s92
      %p96 = pneg %p90
      %p97 = scmp.eq.s32.totalorder %s13, 1
      %p98 = por %p96, %p97
      %p99 = scmp.ne.s32.totalorder %s91, %s94
      %p100 = scmp.eq.s32.totalorder %s13, 0
      %p101 = por %p99, %p100
      %p102 = scmp.ne.s32.totalorder %s91, %s94
      %p103 = scmp.eq.s32.totalorder %s18, 1
      %p104 = por %p102, %p103
      %p105 = scmp.ne.s32.totalorder %s94, %s95
      %p106 = scmp.eq.s32.totalorder %s18, 0
      %p107 = por %p105, %p106
      %p108 = scmp.ne.s32.totalorder %s94, %s95
      %p109 = scmp.eq.s32.totalorder %s19, 1
      %p110 = por %p108, %p109
      %p112 = scmp.ne.s32.totalorder %s95, %s111
      %p113 = scmp.eq.s32.totalorder %s19, 0
      %p114 = por %p112, %p113
      %s115 = ssub.s32 %s13, %s20
      %p116 = scmp.eq.s32.totalorder %s115, 0
      %s118 = sadd.s32 %s117, 1
      %s119 = scalar_select %p116, %s117, %s118
      %p122 = pneg %p116
      %p123 = scmp.eq.s32.totalorder %s13, 1
      %p124 = por %p122, %p123
      %p125 = scmp.ne.s32.totalorder %s117, %s120
      %p126 = scmp.eq.s32.totalorder %s13, 0
      %p127 = por %p125, %p126
      %p128 = scmp.ne.s32.totalorder %s117, %s120
      %p129 = scmp.eq.s32.totalorder %s18, 1
      %p130 = por %p128, %p129
      %p131 = scmp.ne.s32.totalorder %s120, %s121
      %p132 = scmp.eq.s32.totalorder %s18, 0
      %p133 = por %p131, %p132
      %p134 = scmp.ne.s32.totalorder %s120, %s121
      %p135 = scmp.eq.s32.totalorder %s19, 1
      %p136 = por %p134, %p135
      %p138 = scmp.ne.s32.totalorder %s121, %s137
      %p139 = scmp.eq.s32.totalorder %s19, 0
      %p140 = por %p138, %p139
      %p141 = scmp.le.s32.totalorder 1, %s13
      %p142 = scmp.lt.s32.totalorder %s13, 3
      %p143 = pnand %p141, %p142
      %p144 = pneg %p143
      // Predicated region
      $region9: #{tpu_custom_call.1} parent=5 // pred_check
        _
      $region10: #{tpu_custom_call.1} parent=5 // pred_check_branch
        %146 = sbr.rel (%p143) target = $region12
      $region11: #{tpu_custom_call.1} parent=5 // pred_region
        %s147 = ssub.s32 %s13, 1
        // Predicated region
        $region13: #{tpu_custom_call.1} parent=11 // pred_check
          %p148 = pneg %p60
        $region14: #{tpu_custom_call.1} parent=11 // pred_check_branch
          %150 = sbr.rel (%p148) target = $region16
        $region15: #{tpu_custom_call.1} parent=11 // pred_region
          _
        $region16: #{tpu_custom_call.1} parent=11 // pred_fallthru
          _
        // Predicated region
        $region17: #{tpu_custom_call.1} parent=11 // pred_check
          %p151 = pneg %p81
        $region18: #{tpu_custom_call.1} parent=11 // pred_check_branch
          %153 = sbr.rel (%p151) target = $region20
        $region19: #{tpu_custom_call.1} parent=11 // pred_region
          _
        $region20: #{tpu_custom_call.1} parent=11 // pred_fallthru
          _
      $region12: #{tpu_custom_call.1} parent=5 // pred_fallthru
        _
      %p154 = scmp.lt.s32.totalorder %s13, 2
      // Predicated region
      $region21: #{tpu_custom_call.1} parent=5 // pred_check
        %p155 = pneg %p154
      $region22: #{tpu_custom_call.1} parent=5 // pred_check_branch
        %157 = sbr.rel (%p155) target = $region24
      $region23: #{tpu_custom_call.1} parent=5 // pred_region
        // Predicated region
        $region25: #{tpu_custom_call.1} parent=23 // pred_check
          %p158 = pneg %p33
        $region26: #{tpu_custom_call.1} parent=23 // pred_check_branch
          %160 = sbr.rel (%p158) target = $region28
        $region27: #{tpu_custom_call.1} parent=23 // pred_region
          %s161 = smul.u32 4, %s13
          %p162 = scmp.lt.s32.totalorder %s161, 7
          %s163 = scalar_select %p162, %s161, 7
          %s164 = smul.addr %s163, 4
          %s165 = scalar_lea.vmem %s0, %s164
          %s166 = smul.u32 4, %s13
        $region28: #{tpu_custom_call.1} parent=23 // pred_fallthru
          _
        // Predicated region
        $region29: #{tpu_custom_call.1} parent=23 // pred_check
          %p167 = pneg %p101
        $region30: #{tpu_custom_call.1} parent=23 // pred_check_branch
          %169 = sbr.rel (%p167) target = $region32
        $region31: #{tpu_custom_call.1} parent=23 // pred_region
          %s170 = smul.u32 4, %s13
          %p171 = scmp.lt.s32.totalorder %s170, 7
          %s172 = scalar_select %p171, %s170, 7
          %s173 = smul.addr %s172, 8
          %s174 = scalar_lea.vmem %s3, %s173
          %s175 = smul.u32 4, %s13
        $region32: #{tpu_custom_call.1} parent=23 // pred_fallthru
          _
      $region24: #{tpu_custom_call.1} parent=5 // pred_fallthru
        _
      %p176 = scmp.le.s32.totalorder 1, %s13
      %p177 = scmp.lt.s32.totalorder %s13, 3
      %p178 = pnand %p176, %p177
      %p179 = pneg %p178
      // Predicated region
      $region33: #{tpu_custom_call.1} parent=5 // pred_check
        _
      $region34: #{tpu_custom_call.1} parent=5 // pred_check_branch
        %181 = sbr.rel (%p178) target = $region36
      $region35: #{tpu_custom_call.1} parent=5 // pred_region
        %s182 = ssub.s32 %s13, 1
        %s183 = smul.u32 4, %s18
        %p184 = scmp.lt.s32.totalorder %s183, 7
        %s185 = scalar_select %p184, %s183, 7
        %s186 = smul.addr %s185, 4
        %s187 = scalar_lea.vmem %s0, %s186
        %p188 = pneg %p39
        %p189 = pneg %p36
        %p190 = pneg %p60
        %p191 = pneg %p57
        %p192 = pneg %p81
        %p193 = pneg %p78
        %s194 = smul.u32 4, %s18
        %p195 = scmp.lt.s32.totalorder %s194, 7
        %s196 = scalar_select %p195, %s194, 7
        %s197 = smul.addr %s196, 8
        %s198 = scalar_lea.vmem %s3, %s197
        %p199 = pneg %p107
        %p200 = pneg %p104
        %p201 = pneg %p133
        %p202 = pneg %p130
        %s203 = sand.u32 %s120, 1
        %s204 = scalar_lea.sflag [#allocation3], %s203
        %s205 = sand.u32 %s120, 1
        %s206 = smul.addr %s205, 32
        %s207 = scalar_lea.vmem [#allocation2], %s206
        %s208 = smul.u32 4, %s18
        %p209 = scmp.lt.s32.totalorder %s208, 7
        %s210 = scalar_select %p209, %s208, 7
        %s211 = smul.addr %s210, 4
        %s212 = scalar_lea.vmem %s0, %s211
        %s213 = smul.u32 4, %s18
        %s214 = smul.u32 4, %s18
        %p215 = scmp.lt.s32.totalorder %s214, 7
        %s216 = scalar_select %p215, %s214, 7
        %s217 = smul.addr %s216, 8
        %s218 = scalar_lea.vmem %s3, %s217
        %s219 = smul.u32 4, %s18
        %s220 = smul.u32 4, %s18
        %v221 = vld [vmem:[%s212] sm:$0xf]
        %v222 = vld [vmem:[%s212 + $0x4] sm:$0xf]
        %v223 = vld [vmem:[%s212 + $0x8] sm:$0xf]
        %v224 = vld [vmem:[%s212 + $0xc] sm:$0xf]
        %v225 = vld [vmem:[%s1] sm:$0xff]
        %v226 = vld [vmem:[%s2] sm:$0xf]
        %vm227 = vcmask 31744
        %v229 = vsel %vm227, %v225, 0
        %vm231 = vcmask 1043456
        %v233 = vsel %vm231, %v221, 0
        %235 = vmatprep.subr.mxu0 0.0
        %236 = vmatpush1.msra.mxu0 %v233
        %237 = vmatprep.subr.mxu0 0.0
        %238 = vmatpush1.msra.mxu0 0.0
        %239 = vmatprep.subr.mxu0 0.0
        %240 = vmatpush1.msra.mxu0 0.0
        %241 = vmatprep.subr.mxu0 0.0
        %242 = vmatpush1.msra.mxu0 0.0
        %243 = vmatprep.subr.mxu0 0.0
        %244 = vmatpush1.msra.mxu0 0.0
        %245 = vmatprep.subr.mxu0 0.0
        %246 = vmatpush1.msra.mxu0 0.0
        %247 = vmatprep.subr.mxu0 0.0
        %248 = vmatpush1.msra.mxu0 0.0
        %249 = vmatprep.subr.mxu0 0.0
        %250 = vmatpush1.msra.mxu0 0.0
        %251 = vmatprep.subr.mxu0 0.0
        %252 = vmatpush1.msra.mxu0 0.0
        %253 = vmatprep.subr.mxu0 0.0
        %254 = vmatpush1.msra.mxu0 0.0
        %255 = vmatprep.subr.mxu0 0.0
        %256 = vmatpush1.msra.mxu0 0.0
        %257 = vmatprep.subr.mxu0 0.0
        %258 = vmatpush1.msra.mxu0 0.0
        %259 = vmatprep.subr.mxu0 0.0
        %260 = vmatpush1.msra.mxu0 0.0
        %261 = vmatprep.subr.mxu0 0.0
        %262 = vmatpush1.msra.mxu0 0.0
        %263 = vmatprep.subr.mxu0 0.0
        %264 = vmatpush1.msra.mxu0 0.0
        %265 = vmatprep.subr.mxu0 0.0
        %266 = vmatpush1.msra.mxu0 0.0
        %267 = vmatprep.subr.mxu0 0.0
        %268 = vmatpush1.msra.mxu0 0.0
        %269 = vmatprep.subr.mxu0 0.0
        %270 = vmatpush1.msra.mxu0 0.0
        %271 = vmatprep.subr.mxu0 0.0
        %272 = vmatpush1.msra.mxu0 0.0
        %273 = vmatprep.subr.mxu0 0.0
        %274 = vmatpush1.msra.mxu0 0.0
        %275 = vmatprep.subr.mxu0 0.0
        %276 = vmatpush1.msra.mxu0 0.0
        %277 = vmatprep.subr.mxu0 0.0
        %278 = vmatpush1.msra.mxu0 0.0
        %279 = vmatprep.subr.mxu0 0.0
        %280 = vmatpush1.msra.mxu0 0.0
        %281 = vmatprep.subr.mxu0 0.0
        %282 = vmatpush1.msra.mxu0 0.0
        %283 = vmatprep.subr.mxu0 0.0
        %284 = vmatpush1.msra.mxu0 0.0
        %285 = vmatprep.subr.mxu0 0.0
        %286 = vmatpush1.msra.mxu0 0.0
        %287 = vmatprep.subr.mxu0 0.0
        %288 = vmatpush1.msra.mxu0 0.0
        %289 = vmatprep.subr.mxu0 0.0
        %290 = vmatpush1.msra.mxu0 0.0
        %291 = vmatprep.subr.mxu0 0.0
        %292 = vmatpush1.msra.mxu0 0.0
        %293 = vmatprep.subr.mxu0 0.0
        %294 = vmatpush1.msra.mxu0 0.0
        %295 = vmatprep.subr.mxu0 0.0
        %296 = vmatpush1.msra.mxu0 0.0
        %297 = vmatprep.subr.mxu0 0.0
        %298 = vmatpush1.msra.mxu0 0.0
        %299 = vmatprep.mubr.f32.mxu0 0.0
        %300 = vmatmul.mubr.f32.gmra.mrb[0].mxu0 %v229
        %v301 = vpop.f32.mrb[0].mxu0
        %v302 = vadd.f32 0.0, %v301
        %v303 = vpop.f32.mrb[0].mxu0
        %304 = vdwg.mxu0
        %v306 = vsel %vm231, %v222, 0
        %308 = vmatprep.subr.mxu0 0.0
        %309 = vmatpush1.msra.mxu0 %v306
        %310 = vmatprep.subr.mxu0 0.0
        %311 = vmatpush1.msra.mxu0 0.0
        %312 = vmatprep.subr.mxu0 0.0
        %313 = vmatpush1.msra.mxu0 0.0
        %314 = vmatprep.subr.mxu0 0.0
        %315 = vmatpush1.msra.mxu0 0.0
        %316 = vmatprep.subr.mxu0 0.0
        %317 = vmatpush1.msra.mxu0 0.0
        %318 = vmatprep.subr.mxu0 0.0
        %319 = vmatpush1.msra.mxu0 0.0
        %320 = vmatprep.subr.mxu0 0.0
        %321 = vmatpush1.msra.mxu0 0.0
        %322 = vmatprep.subr.mxu0 0.0
        %323 = vmatpush1.msra.mxu0 0.0
        %324 = vmatprep.subr.mxu0 0.0
        %325 = vmatpush1.msra.mxu0 0.0
        %326 = vmatprep.subr.mxu0 0.0
        %327 = vmatpush1.msra.mxu0 0.0
        %328 = vmatprep.subr.mxu0 0.0
        %329 = vmatpush1.msra.mxu0 0.0
        %330 = vmatprep.subr.mxu0 0.0
        %331 = vmatpush1.msra.mxu0 0.0
        %332 = vmatprep.subr.mxu0 0.0
        %333 = vmatpush1.msra.mxu0 0.0
        %334 = vmatprep.subr.mxu0 0.0
        %335 = vmatpush1.msra.mxu0 0.0
        %336 = vmatprep.subr.mxu0 0.0
        %337 = vmatpush1.msra.mxu0 0.0
        %338 = vmatprep.subr.mxu0 0.0
        %339 = vmatpush1.msra.mxu0 0.0
        %340 = vmatprep.subr.mxu0 0.0
        %341 = vmatpush1.msra.mxu0 0.0
        %342 = vmatprep.subr.mxu0 0.0
        %343 = vmatpush1.msra.mxu0 0.0
        %344 = vmatprep.subr.mxu0 0.0
        %345 = vmatpush1.msra.mxu0 0.0
        %346 = vmatprep.subr.mxu0 0.0
        %347 = vmatpush1.msra.mxu0 0.0
        %348 = vmatprep.subr.mxu0 0.0
        %349 = vmatpush1.msra.mxu0 0.0
        %350 = vmatprep.subr.mxu0 0.0
        %351 = vmatpush1.msra.mxu0 0.0
        %352 = vmatprep.subr.mxu0 0.0
        %353 = vmatpush1.msra.mxu0 0.0
        %354 = vmatprep.subr.mxu0 0.0
        %355 = vmatpush1.msra.mxu0 0.0
        %356 = vmatprep.subr.mxu0 0.0
        %357 = vmatpush1.msra.mxu0 0.0
        %358 = vmatprep.subr.mxu0 0.0
        %359 = vmatpush1.msra.mxu0 0.0
        %360 = vmatprep.subr.mxu0 0.0
        %361 = vmatpush1.msra.mxu0 0.0
        %362 = vmatprep.subr.mxu0 0.0
        %363 = vmatpush1.msra.mxu0 0.0
        %364 = vmatprep.subr.mxu0 0.0
        %365 = vmatpush1.msra.mxu0 0.0
        %366 = vmatprep.subr.mxu0 0.0
        %367 = vmatpush1.msra.mxu0 0.0
        %368 = vmatprep.subr.mxu0 0.0
        %369 = vmatpush1.msra.mxu0 0.0
        %370 = vmatprep.subr.mxu0 0.0
        %371 = vmatpush1.msra.mxu0 0.0
        %372 = vmatprep.mubr.f32.mxu0 0.0
        %373 = vmatmul.mubr.f32.gmra.mrb[0].mxu0 %v229
        %v374 = vpop.f32.mrb[0].mxu0
        %v375 = vadd.f32 0.0, %v374
        %v376 = vpop.f32.mrb[0].mxu0
        %377 = vdwg.mxu0
        %v379 = vsel %vm231, %v223, 0
        %381 = vmatprep.subr.mxu0 0.0
        %382 = vmatpush1.msra.mxu0 %v379
        %383 = vmatprep.subr.mxu0 0.0
        %384 = vmatpush1.msra.mxu0 0.0
        %385 = vmatprep.subr.mxu0 0.0
        %386 = vmatpush1.msra.mxu0 0.0
        %387 = vmatprep.subr.mxu0 0.0
        %388 = vmatpush1.msra.mxu0 0.0
        %389 = vmatprep.subr.mxu0 0.0
        %390 = vmatpush1.msra.mxu0 0.0
        %391 = vmatprep.subr.mxu0 0.0
        %392 = vmatpush1.msra.mxu0 0.0
        %393 = vmatprep.subr.mxu0 0.0
        %394 = vmatpush1.msra.mxu0 0.0
        %395 = vmatprep.subr.mxu0 0.0
        %396 = vmatpush1.msra.mxu0 0.0
        %397 = vmatprep.subr.mxu0 0.0
        %398 = vmatpush1.msra.mxu0 0.0
        %399 = vmatprep.subr.mxu0 0.0
        %400 = vmatpush1.msra.mxu0 0.0
        %401 = vmatprep.subr.mxu0 0.0
        %402 = vmatpush1.msra.mxu0 0.0
        %403 = vmatprep.subr.mxu0 0.0
        %404 = vmatpush1.msra.mxu0 0.0
        %405 = vmatprep.subr.mxu0 0.0
        %406 = vmatpush1.msra.mxu0 0.0
        %407 = vmatprep.subr.mxu0 0.0
        %408 = vmatpush1.msra.mxu0 0.0
        %409 = vmatprep.subr.mxu0 0.0
        %410 = vmatpush1.msra.mxu0 0.0
        %411 = vmatprep.subr.mxu0 0.0
        %412 = vmatpush1.msra.mxu0 0.0
        %413 = vmatprep.subr.mxu0 0.0
        %414 = vmatpush1.msra.mxu0 0.0
        %415 = vmatprep.subr.mxu0 0.0
        %416 = vmatpush1.msra.mxu0 0.0
        %417 = vmatprep.subr.mxu0 0.0
        %418 = vmatpush1.msra.mxu0 0.0
        %419 = vmatprep.subr.mxu0 0.0
        %420 = vmatpush1.msra.mxu0 0.0
        %421 = vmatprep.subr.mxu0 0.0
        %422 = vmatpush1.msra.mxu0 0.0
        %423 = vmatprep.subr.mxu0 0.0
        %424 = vmatpush1.msra.mxu0 0.0
        %425 = vmatprep.subr.mxu0 0.0
        %426 = vmatpush1.msra.mxu0 0.0
        %427 = vmatprep.subr.mxu0 0.0
        %428 = vmatpush1.msra.mxu0 0.0
        %429 = vmatprep.subr.mxu0 0.0
        %430 = vmatpush1.msra.mxu0 0.0
        %431 = vmatprep.subr.mxu0 0.0
        %432 = vmatpush1.msra.mxu0 0.0
        %433 = vmatprep.subr.mxu0 0.0
        %434 = vmatpush1.msra.mxu0 0.0
        %435 = vmatprep.subr.mxu0 0.0
        %436 = vmatpush1.msra.mxu0 0.0
        %437 = vmatprep.subr.mxu0 0.0
        %438 = vmatpush1.msra.mxu0 0.0
        %439 = vmatprep.subr.mxu0 0.0
        %440 = vmatpush1.msra.mxu0 0.0
        %441 = vmatprep.subr.mxu0 0.0
        %442 = vmatpush1.msra.mxu0 0.0
        %443 = vmatprep.subr.mxu0 0.0
        %444 = vmatpush1.msra.mxu0 0.0
        %445 = vmatprep.mubr.f32.mxu0 0.0
        %446 = vmatmul.mubr.f32.gmra.mrb[0].mxu0 %v229
        %v447 = vpop.f32.mrb[0].mxu0
        %v448 = vadd.f32 0.0, %v447
        %v449 = vpop.f32.mrb[0].mxu0
        %450 = vdwg.mxu0
        %v452 = vsel %vm231, %v224, 0
        %454 = vmatprep.subr.mxu0 0.0
        %455 = vmatpush1.msra.mxu0 %v452
        %456 = vmatprep.subr.mxu0 0.0
        %457 = vmatpush1.msra.mxu0 0.0
        %458 = vmatprep.subr.mxu0 0.0
        %459 = vmatpush1.msra.mxu0 0.0
        %460 = vmatprep.subr.mxu0 0.0
        %461 = vmatpush1.msra.mxu0 0.0
        %462 = vmatprep.subr.mxu0 0.0
        %463 = vmatpush1.msra.mxu0 0.0
        %464 = vmatprep.subr.mxu0 0.0
        %465 = vmatpush1.msra.mxu0 0.0
        %466 = vmatprep.subr.mxu0 0.0
        %467 = vmatpush1.msra.mxu0 0.0
        %468 = vmatprep.subr.mxu0 0.0
        %469 = vmatpush1.msra.mxu0 0.0
        %470 = vmatprep.subr.mxu0 0.0
        %471 = vmatpush1.msra.mxu0 0.0
        %472 = vmatprep.subr.mxu0 0.0
        %473 = vmatpush1.msra.mxu0 0.0
        %474 = vmatprep.subr.mxu0 0.0
        %475 = vmatpush1.msra.mxu0 0.0
        %476 = vmatprep.subr.mxu0 0.0
        %477 = vmatpush1.msra.mxu0 0.0
        %478 = vmatprep.subr.mxu0 0.0
        %479 = vmatpush1.msra.mxu0 0.0
        %480 = vmatprep.subr.mxu0 0.0
        %481 = vmatpush1.msra.mxu0 0.0
        %482 = vmatprep.subr.mxu0 0.0
        %483 = vmatpush1.msra.mxu0 0.0
        %484 = vmatprep.subr.mxu0 0.0
        %485 = vmatpush1.msra.mxu0 0.0
        %486 = vmatprep.subr.mxu0 0.0
        %487 = vmatpush1.msra.mxu0 0.0
        %488 = vmatprep.subr.mxu0 0.0
        %489 = vmatpush1.msra.mxu0 0.0
        %490 = vmatprep.subr.mxu0 0.0
        %491 = vmatpush1.msra.mxu0 0.0
        %492 = vmatprep.subr.mxu0 0.0
        %493 = vmatpush1.msra.mxu0 0.0
        %494 = vmatprep.subr.mxu0 0.0
        %495 = vmatpush1.msra.mxu0 0.0
        %496 = vmatprep.subr.mxu0 0.0
        %497 = vmatpush1.msra.mxu0 0.0
        %498 = vmatprep.subr.mxu0 0.0
        %499 = vmatpush1.msra.mxu0 0.0
        %500 = vmatprep.subr.mxu0 0.0
        %501 = vmatpush1.msra.mxu0 0.0
        %502 = vmatprep.subr.mxu0 0.0
        %503 = vmatpush1.msra.mxu0 0.0
        %504 = vmatprep.subr.mxu0 0.0
        %505 = vmatpush1.msra.mxu0 0.0
        %506 = vmatprep.subr.mxu0 0.0
        %507 = vmatpush1.msra.mxu0 0.0
        %508 = vmatprep.subr.mxu0 0.0
        %509 = vmatpush1.msra.mxu0 0.0
        %510 = vmatprep.subr.mxu0 0.0
        %511 = vmatpush1.msra.mxu0 0.0
        %512 = vmatprep.subr.mxu0 0.0
        %513 = vmatpush1.msra.mxu0 0.0
        %514 = vmatprep.subr.mxu0 0.0
        %515 = vmatpush1.msra.mxu0 0.0
        %516 = vmatprep.subr.mxu0 0.0
        %517 = vmatpush1.msra.mxu0 0.0
        %518 = vmatprep.mubr.f32.mxu0 0.0
        %519 = vmatmul.mubr.f32.gmra.mrb[0].mxu0 %v229
        %v520 = vpop.f32.mrb[0].mxu0
        %v521 = vadd.f32 0.0, %v520
        %v522 = vpop.f32.mrb[0].mxu0
        %523 = vdwg.mxu0
        %v524 = vld [vmem:[%s218] sm:$0xff]
        %v525 = vld [vmem:[%s218 + $0x8] sm:$0xff]
        %v526 = vld [vmem:[%s218 + $0x10] sm:$0xff]
        %v527 = vld [vmem:[%s218 + $0x18] sm:$0xff]
        %v529 = vsel %vm227, %v302, 0
        %v532 = vsel %vm231, %v226, 0
        %534 = vmatprep.subr.mxu0 0.0
        %535 = vmatpush1.msra.mxu0 %v532
        %536 = vmatprep.subr.mxu0 0.0
        %537 = vmatpush1.msra.mxu0 0.0
        %538 = vmatprep.subr.mxu0 0.0
        %539 = vmatpush1.msra.mxu0 0.0
        %540 = vmatprep.subr.mxu0 0.0
        %541 = vmatpush1.msra.mxu0 0.0
        %542 = vmatprep.subr.mxu0 0.0
        %543 = vmatpush1.msra.mxu0 0.0
        %544 = vmatprep.subr.mxu0 0.0
        %545 = vmatpush1.msra.mxu0 0.0
        %546 = vmatprep.subr.mxu0 0.0
        %547 = vmatpush1.msra.mxu0 0.0
        %548 = vmatprep.subr.mxu0 0.0
        %549 = vmatpush1.msra.mxu0 0.0
        %550 = vmatprep.subr.mxu0 0.0
        %551 = vmatpush1.msra.mxu0 0.0
        %552 = vmatprep.subr.mxu0 0.0
        %553 = vmatpush1.msra.mxu0 0.0
        %554 = vmatprep.subr.mxu0 0.0
        %555 = vmatpush1.msra.mxu0 0.0
        %556 = vmatprep.subr.mxu0 0.0
        %557 = vmatpush1.msra.mxu0 0.0
        %558 = vmatprep.subr.mxu0 0.0
        %559 = vmatpush1.msra.mxu0 0.0
        %560 = vmatprep.subr.mxu0 0.0
        %561 = vmatpush1.msra.mxu0 0.0
        %562 = vmatprep.subr.mxu0 0.0
        %563 = vmatpush1.msra.mxu0 0.0
        %564 = vmatprep.subr.mxu0 0.0
        %565 = vmatpush1.msra.mxu0 0.0
        %566 = vmatprep.subr.mxu0 0.0
        %567 = vmatpush1.msra.mxu0 0.0
        %568 = vmatprep.subr.mxu0 0.0
        %569 = vmatpush1.msra.mxu0 0.0
        %570 = vmatprep.subr.mxu0 0.0
        %571 = vmatpush1.msra.mxu0 0.0
        %572 = vmatprep.subr.mxu0 0.0
        %573 = vmatpush1.msra.mxu0 0.0
        %574 = vmatprep.subr.mxu0 0.0
        %575 = vmatpush1.msra.mxu0 0.0
        %576 = vmatprep.subr.mxu0 0.0
        %577 = vmatpush1.msra.mxu0 0.0
        %578 = vmatprep.subr.mxu0 0.0
        %579 = vmatpush1.msra.mxu0 0.0
        %580 = vmatprep.subr.mxu0 0.0
        %581 = vmatpush1.msra.mxu0 0.0
        %582 = vmatprep.subr.mxu0 0.0
        %583 = vmatpush1.msra.mxu0 0.0
        %584 = vmatprep.subr.mxu0 0.0
        %585 = vmatpush1.msra.mxu0 0.0
        %586 = vmatprep.subr.mxu0 0.0
        %587 = vmatpush1.msra.mxu0 0.0
        %588 = vmatprep.subr.mxu0 0.0
        %589 = vmatpush1.msra.mxu0 0.0
        %590 = vmatprep.subr.mxu0 0.0
        %591 = vmatpush1.msra.mxu0 0.0
        %592 = vmatprep.subr.mxu0 0.0
        %593 = vmatpush1.msra.mxu0 0.0
        %594 = vmatprep.subr.mxu0 0.0
        %595 = vmatpush1.msra.mxu0 0.0
        %596 = vmatprep.subr.mxu0 0.0
        %597 = vmatpush1.msra.mxu0 0.0
        %598 = vmatprep.mubr.f32.mxu0 0.0
        %599 = vmatmul.mubr.f32.gmra.mrb[0].mxu0 %v529
        %v600 = vpop.f32.mrb[0].mxu0
        %v601 = vadd.f32 %v524, %v600
        %v602 = vpop.f32.mrb[0].mxu0
        %603 = vdwg.mxu0
        %v605 = vsel %vm227, %v375, 0
        %607 = vmatprep.subr.mxu0 0.0
        %608 = vmatpush1.msra.mxu0 %v532
        %609 = vmatprep.subr.mxu0 0.0
        %610 = vmatpush1.msra.mxu0 0.0
        %611 = vmatprep.subr.mxu0 0.0
        %612 = vmatpush1.msra.mxu0 0.0
        %613 = vmatprep.subr.mxu0 0.0
        %614 = vmatpush1.msra.mxu0 0.0
        %615 = vmatprep.subr.mxu0 0.0
        %616 = vmatpush1.msra.mxu0 0.0
        %617 = vmatprep.subr.mxu0 0.0
        %618 = vmatpush1.msra.mxu0 0.0
        %619 = vmatprep.subr.mxu0 0.0
        %620 = vmatpush1.msra.mxu0 0.0
        %621 = vmatprep.subr.mxu0 0.0
        %622 = vmatpush1.msra.mxu0 0.0
        %623 = vmatprep.subr.mxu0 0.0
        %624 = vmatpush1.msra.mxu0 0.0
        %625 = vmatprep.subr.mxu0 0.0
        %626 = vmatpush1.msra.mxu0 0.0
        %627 = vmatprep.subr.mxu0 0.0
        %628 = vmatpush1.msra.mxu0 0.0
        %629 = vmatprep.subr.mxu0 0.0
        %630 = vmatpush1.msra.mxu0 0.0
        %631 = vmatprep.subr.mxu0 0.0
        %632 = vmatpush1.msra.mxu0 0.0
        %633 = vmatprep.subr.mxu0 0.0
        %634 = vmatpush1.msra.mxu0 0.0
        %635 = vmatprep.subr.mxu0 0.0
        %636 = vmatpush1.msra.mxu0 0.0
        %637 = vmatprep.subr.mxu0 0.0
        %638 = vmatpush1.msra.mxu0 0.0
        %639 = vmatprep.subr.mxu0 0.0
        %640 = vmatpush1.msra.mxu0 0.0
        %641 = vmatprep.subr.mxu0 0.0
        %642 = vmatpush1.msra.mxu0 0.0
        %643 = vmatprep.subr.mxu0 0.0
        %644 = vmatpush1.msra.mxu0 0.0
        %645 = vmatprep.subr.mxu0 0.0
        %646 = vmatpush1.msra.mxu0 0.0
        %647 = vmatprep.subr.mxu0 0.0
        %648 = vmatpush1.msra.mxu0 0.0
        %649 = vmatprep.subr.mxu0 0.0
        %650 = vmatpush1.msra.mxu0 0.0
        %651 = vmatprep.subr.mxu0 0.0
        %652 = vmatpush1.msra.mxu0 0.0
        %653 = vmatprep.subr.mxu0 0.0
        %654 = vmatpush1.msra.mxu0 0.0
        %655 = vmatprep.subr.mxu0 0.0
        %656 = vmatpush1.msra.mxu0 0.0
        %657 = vmatprep.subr.mxu0 0.0
        %658 = vmatpush1.msra.mxu0 0.0
        %659 = vmatprep.subr.mxu0 0.0
        %660 = vmatpush1.msra.mxu0 0.0
        %661 = vmatprep.subr.mxu0 0.0
        %662 = vmatpush1.msra.mxu0 0.0
        %663 = vmatprep.subr.mxu0 0.0
        %664 = vmatpush1.msra.mxu0 0.0
        %665 = vmatprep.subr.mxu0 0.0
        %666 = vmatpush1.msra.mxu0 0.0
        %667 = vmatprep.subr.mxu0 0.0
        %668 = vmatpush1.msra.mxu0 0.0
        %669 = vmatprep.subr.mxu0 0.0
        %670 = vmatpush1.msra.mxu0 0.0
        %671 = vmatprep.mubr.f32.mxu0 0.0
        %672 = vmatmul.mubr.f32.gmra.mrb[0].mxu0 %v605
        %v673 = vpop.f32.mrb[0].mxu0
        %v674 = vadd.f32 %v525, %v673
        %v675 = vpop.f32.mrb[0].mxu0
        %676 = vdwg.mxu0
        %v678 = vsel %vm227, %v448, 0
        %680 = vmatprep.subr.mxu0 0.0
        %681 = vmatpush1.msra.mxu0 %v532
        %682 = vmatprep.subr.mxu0 0.0
        %683 = vmatpush1.msra.mxu0 0.0
        %684 = vmatprep.subr.mxu0 0.0
        %685 = vmatpush1.msra.mxu0 0.0
        %686 = vmatprep.subr.mxu0 0.0
        %687 = vmatpush1.msra.mxu0 0.0
        %688 = vmatprep.subr.mxu0 0.0
        %689 = vmatpush1.msra.mxu0 0.0
        %690 = vmatprep.subr.mxu0 0.0
        %691 = vmatpush1.msra.mxu0 0.0
        %692 = vmatprep.subr.mxu0 0.0
        %693 = vmatpush1.msra.mxu0 0.0
        %694 = vmatprep.subr.mxu0 0.0
        %695 = vmatpush1.msra.mxu0 0.0
        %696 = vmatprep.subr.mxu0 0.0
        %697 = vmatpush1.msra.mxu0 0.0
        %698 = vmatprep.subr.mxu0 0.0
        %699 = vmatpush1.msra.mxu0 0.0
        %700 = vmatprep.subr.mxu0 0.0
        %701 = vmatpush1.msra.mxu0 0.0
        %702 = vmatprep.subr.mxu0 0.0
        %703 = vmatpush1.msra.mxu0 0.0
        %704 = vmatprep.subr.mxu0 0.0
        %705 = vmatpush1.msra.mxu0 0.0
        %706 = vmatprep.subr.mxu0 0.0
        %707 = vmatpush1.msra.mxu0 0.0
        %708 = vmatprep.subr.mxu0 0.0
        %709 = vmatpush1.msra.mxu0 0.0
        %710 = vmatprep.subr.mxu0 0.0
        %711 = vmatpush1.msra.mxu0 0.0
        %712 = vmatprep.subr.mxu0 0.0
        %713 = vmatpush1.msra.mxu0 0.0
        %714 = vmatprep.subr.mxu0 0.0
        %715 = vmatpush1.msra.mxu0 0.0
        %716 = vmatprep.subr.mxu0 0.0
        %717 = vmatpush1.msra.mxu0 0.0
        %718 = vmatprep.subr.mxu0 0.0
        %719 = vmatpush1.msra.mxu0 0.0
        %720 = vmatprep.subr.mxu0 0.0
        %721 = vmatpush1.msra.mxu0 0.0
        %722 = vmatprep.subr.mxu0 0.0
        %723 = vmatpush1.msra.mxu0 0.0
        %724 = vmatprep.subr.mxu0 0.0
        %725 = vmatpush1.msra.mxu0 0.0
        %726 = vmatprep.subr.mxu0 0.0
        %727 = vmatpush1.msra.mxu0 0.0
        %728 = vmatprep.subr.mxu0 0.0
        %729 = vmatpush1.msra.mxu0 0.0
        %730 = vmatprep.subr.mxu0 0.0
        %731 = vmatpush1.msra.mxu0 0.0
        %732 = vmatprep.subr.mxu0 0.0
        %733 = vmatpush1.msra.mxu0 0.0
        %734 = vmatprep.subr.mxu0 0.0
        %735 = vmatpush1.msra.mxu0 0.0
        %736 = vmatprep.subr.mxu0 0.0
        %737 = vmatpush1.msra.mxu0 0.0
        %738 = vmatprep.subr.mxu0 0.0
        %739 = vmatpush1.msra.mxu0 0.0
        %740 = vmatprep.subr.mxu0 0.0
        %741 = vmatpush1.msra.mxu0 0.0
        %742 = vmatprep.subr.mxu0 0.0
        %743 = vmatpush1.msra.mxu0 0.0
        %744 = vmatprep.mubr.f32.mxu0 0.0
        %745 = vmatmul.mubr.f32.gmra.mrb[0].mxu0 %v678
        %v746 = vpop.f32.mrb[0].mxu0
        %v747 = vadd.f32 %v526, %v746
        %v748 = vpop.f32.mrb[0].mxu0
        %749 = vdwg.mxu0
        %v751 = vsel %vm227, %v521, 0
        %753 = vmatprep.subr.mxu0 0.0
        %754 = vmatpush1.msra.mxu0 %v532
        %755 = vmatprep.subr.mxu0 0.0
        %756 = vmatpush1.msra.mxu0 0.0
        %757 = vmatprep.subr.mxu0 0.0
        %758 = vmatpush1.msra.mxu0 0.0
        %759 = vmatprep.subr.mxu0 0.0
        %760 = vmatpush1.msra.mxu0 0.0
        %761 = vmatprep.subr.mxu0 0.0
        %762 = vmatpush1.msra.mxu0 0.0
        %763 = vmatprep.subr.mxu0 0.0
        %764 = vmatpush1.msra.mxu0 0.0
        %765 = vmatprep.subr.mxu0 0.0
        %766 = vmatpush1.msra.mxu0 0.0
        %767 = vmatprep.subr.mxu0 0.0
        %768 = vmatpush1.msra.mxu0 0.0
        %769 = vmatprep.subr.mxu0 0.0
        %770 = vmatpush1.msra.mxu0 0.0
        %771 = vmatprep.subr.mxu0 0.0
        %772 = vmatpush1.msra.mxu0 0.0
        %773 = vmatprep.subr.mxu0 0.0
        %774 = vmatpush1.msra.mxu0 0.0
        %775 = vmatprep.subr.mxu0 0.0
        %776 = vmatpush1.msra.mxu0 0.0
        %777 = vmatprep.subr.mxu0 0.0
        %778 = vmatpush1.msra.mxu0 0.0
        %779 = vmatprep.subr.mxu0 0.0
        %780 = vmatpush1.msra.mxu0 0.0
        %781 = vmatprep.subr.mxu0 0.0
        %782 = vmatpush1.msra.mxu0 0.0
        %783 = vmatprep.subr.mxu0 0.0
        %784 = vmatpush1.msra.mxu0 0.0
        %785 = vmatprep.subr.mxu0 0.0
        %786 = vmatpush1.msra.mxu0 0.0
        %787 = vmatprep.subr.mxu0 0.0
        %788 = vmatpush1.msra.mxu0 0.0
        %789 = vmatprep.subr.mxu0 0.0
        %790 = vmatpush1.msra.mxu0 0.0
        %791 = vmatprep.subr.mxu0 0.0
        %792 = vmatpush1.msra.mxu0 0.0
        %793 = vmatprep.subr.mxu0 0.0
        %794 = vmatpush1.msra.mxu0 0.0
        %795 = vmatprep.subr.mxu0 0.0
        %796 = vmatpush1.msra.mxu0 0.0
        %797 = vmatprep.subr.mxu0 0.0
        %798 = vmatpush1.msra.mxu0 0.0
        %799 = vmatprep.subr.mxu0 0.0
        %800 = vmatpush1.msra.mxu0 0.0
        %801 = vmatprep.subr.mxu0 0.0
        %802 = vmatpush1.msra.mxu0 0.0
        %803 = vmatprep.subr.mxu0 0.0
        %804 = vmatpush1.msra.mxu0 0.0
        %805 = vmatprep.subr.mxu0 0.0
        %806 = vmatpush1.msra.mxu0 0.0
        %807 = vmatprep.subr.mxu0 0.0
        %808 = vmatpush1.msra.mxu0 0.0
        %809 = vmatprep.subr.mxu0 0.0
        %810 = vmatpush1.msra.mxu0 0.0
        %811 = vmatprep.subr.mxu0 0.0
        %812 = vmatpush1.msra.mxu0 0.0
        %813 = vmatprep.subr.mxu0 0.0
        %814 = vmatpush1.msra.mxu0 0.0
        %815 = vmatprep.subr.mxu0 0.0
        %816 = vmatpush1.msra.mxu0 0.0
        %817 = vmatprep.mubr.f32.mxu0 0.0
        %818 = vmatmul.mubr.f32.gmra.mrb[0].mxu0 %v751
        %v819 = vpop.f32.mrb[0].mxu0
        %v820 = vadd.f32 %v527, %v819
        %v821 = vpop.f32.mrb[0].mxu0
        %822 = vdwg.mxu0
        %vm823 = vcmask 64512
        %824 = vst.msk [vmem:[%s207] sm:$0xff] %vm823, %v601
        %825 = vst.msk [vmem:[%s207 + $0x8] sm:$0xff] %vm823, %v674
        %826 = vst.msk [vmem:[%s207 + $0x10] sm:$0xff] %vm823, %v747
        %827 = vst.msk [vmem:[%s207 + $0x18] sm:$0xff] %vm823, %v820
        %s828 = sand.u32 %s120, 1
        %s829 = scalar_lea.sflag [#allocation3], %s828
        %s830 = sand.u32 %s120, 1
        %s831 = smul.addr %s830, 32
        %s832 = scalar_lea.vmem [#allocation2], %s831
        // Predicated region
        $region37: #{tpu_custom_call.1} parent=35 // pred_check
          %p833 = pneg %p130
        $region38: #{tpu_custom_call.1} parent=35 // pred_check_branch
          %835 = sbr.rel (%p833) target = $region40
        $region39: #{tpu_custom_call.1} parent=35 // pred_region
          %s836 = smul.u32 4, %s18
          %s838 = ssub.s32 512, 512
          %839 = vsyncadd %s829, %s838
          %s840 = smul.addr %s836, 128
          %s841 = scalar_lea.hbm %s4, %s840
          %s842 = sshll.u32 %s832, 4
          %s843 = int_to_ptr.vmem [resolvable:$true] %s842
          %848 = dma.vmem_to_hbm [thread:$0]  %s843, 512, %s841, %s829, 128, 128, 8
        $region40: #{tpu_custom_call.1} parent=35 // pred_fallthru
          _
      $region36: #{tpu_custom_call.1} parent=5 // pred_fallthru
        _
      %p849 = scmp.le.s32.totalorder 2, %s13
      // Predicated region
      $region41: #{tpu_custom_call.1} parent=5 // pred_check
        %p850 = pneg %p849
      $region42: #{tpu_custom_call.1} parent=5 // pred_check_branch
        %852 = sbr.rel (%p850) target = $region44
      $region43: #{tpu_custom_call.1} parent=5 // pred_region
        %s853 = ssub.s32 %s13, 2
        // Predicated region
        $region45: #{tpu_custom_call.1} parent=43 // pred_check
          %p854 = pneg %p136
        $region46: #{tpu_custom_call.1} parent=43 // pred_check_branch
          %856 = sbr.rel (%p854) target = $region48
        $region47: #{tpu_custom_call.1} parent=43 // pred_region
          %s857 = sand.u32 %s121, 1
          %s858 = scalar_lea.sflag [#allocation3], %s857
          %s859 = sand.u32 %s121, 1
          %s860 = smul.addr %s859, 32
          %s861 = scalar_lea.vmem [#allocation2], %s860
          %862 = dma.done %s858, 512
        $region48: #{tpu_custom_call.1} parent=43 // pred_fallthru
          _
      $region44: #{tpu_custom_call.1} parent=5 // pred_fallthru
        _
    $region6: #{tpu_custom_call.1} parent=1 // loop_footer
      %s17 = sadd.s32 1, %s13
    $region7: #{tpu_custom_call.1} parent=1 // loop_footer_branch
      %12 = sbr.rel target = $region3
    $region8: #{tpu_custom_call.1} parent=1 // loop_exit
      _
    %863 = vsyncpa [#allocation3], 1
    %s864 = scalar_lea.sflag [#allocation3], 1
    %865 = vsyncpa %s864, 1

</llo_original>
